<compile_context>
chip_gen: v5e
topology: v5e:2x2
jax: 0.10.0
libtpu: 0.0.40
codegen_flags: <defaults>
</compile_context>

<pallas_src>
import math
from types import SimpleNamespace

import jax
import jax.numpy as jnp
from jax.experimental import pallas as pl
from jax.experimental.pallas import tpu as pltpu


# ----------------------------- Pallas LSTM kernel -----------------------------

def _lstm_seq_kernel(x_ref, wih_ref, whh_ref, b_ref, hid_ref):
    """Single-layer LSTM over the whole sequence. Gate order i, f, g, o (PyTorch).

    x_ref   : (B, T, F)  batch-first input (VMEM resident)
    wih_ref : (F, 4H)    W_ih^T
    whh_ref : (H, 4H)    W_hh^T
    b_ref   : (1, 4H)    b_ih + b_hh
    hid_ref : (B, H)     final hidden state (output)
    """
    B, T, F = x_ref.shape
    H = hid_ref.shape[-1]

    # Hoisted input projection + bias: ONE MXU matmul for the whole sequence.
    # Result (B, T, 4H) is lane-dense (4H = 128 for H = 32); no per-step concat,
    # x-matmul or bias add remains on the recurrent critical path.
    x2 = x_ref[...].reshape(B * T, F)
    gx = jnp.dot(x2, wih_ref[...], preferred_element_type=jnp.float32) + b_ref[...]
    gx = gx.reshape(B, T, 4 * H)

    whh = whh_ref[...]                                    # recurrent weight, loaded once
    # TODO(synk): keep W_hh resident in the MXU via matmul_push_rhs/acc_lhs/pop
    # to avoid re-streaming it per step; plain jnp.dot is kept here for safety.

    h = jnp.zeros((B, H), jnp.float32)
    c = jnp.zeros((B, H), jnp.float32)

    # Statically unrolled time loop (T is a compile-time constant); recurrent
    # state stays in vregs.  Per step: one (B,H)x(H,4H) MXU matmul, 2 full-width
    # EUP activations, tanh(c), and a handful of VPU ops.
    # TODO(synk): for long sequences switch to lax.fori_loop(..., unroll=4..8)
    # over gates_x and a T-chunked grid axis so unroll size / VMEM stay bounded.
    for t in range(T):
        gates = gx[:, t, :] + jnp.dot(h, whh, preferred_element_type=jnp.float32)
        # Activations over the full lane-dense (B, 4H) value: 2 EUP passes
        # instead of 4 sliced 32-lane ones; slices below are static & free.
        sig = jax.nn.sigmoid(gates)
        tah = jnp.tanh(gates)
        i_g = sig[:, 0 * H:1 * H]
        f_g = sig[:, 1 * H:2 * H]
        g_g = tah[:, 2 * H:3 * H]
        o_g = sig[:, 3 * H:4 * H]
        c = f_g * c + i_g * g_g
        h = o_g * jnp.tanh(c)

    hid_ref[...] = h.astype(hid_ref.dtype)                # single (B, H) store


def _vmem_limit_bytes(B, T, F, H):
    """Generation-aware VMEM request: enough for this kernel, never the whole chip."""
    lane = 128
    pad = lambda n: -(-n // lane) * lane
    est = 4 * (B * T * pad(F)               # x block (lane-padded VMEM residency)
               + B * T * 4 * H              # hoisted gates_x
               + (F + H) * 4 * H + 4 * H    # weights + bias
               + 8 * B * H)                 # h/c/gates working set + output
    want = max(4 * est, 4 << 20)            # generous headroom for compiler scratch
    try:
        cap = int(pltpu.get_tpu_info().vmem_capacity_bytes)
    except Exception:
        cap = 64 << 20                      # assume smallest generation (v7x) if query fails
    return int(min(want, (cap * 3) // 4))   # leave headroom; portable v5e/v6e/v7x


@jax.jit
def lstm_pallas(x_btf, w_ih_t, w_hh_t, bias):
    """Single-layer unidirectional LSTM, final hidden state only.

    x_btf  : (B, T, F) batch-first input (PyTorch convention, no transpose)
    w_ih_t : (F, 4H)   W_ih^T, gate order i,f,g,o
    w_hh_t : (H, 4H)   W_hh^T
    bias   : (1, 4H)   b_ih + b_hh
    returns hid : (B, H) final hidden state (== hid[0] of PyTorch nn.LSTM)
    """
    B, T, F = x_btf.shape
    H = w_hh_t.shape[0]

    x = x_btf.astype(jnp.float32)
    vmem_spec = pl.BlockSpec(memory_space=pltpu.MemorySpace.VMEM)

    hid = pl.pallas_call(
        _lstm_seq_kernel,
        out_shape=jax.ShapeDtypeStruct((B, H), jnp.float32),
        # No grid: one invocation, operands resident in VMEM exactly once
        # (no pipeline double-buffering, no per-grid-step overhead).
        in_specs=[vmem_spec, vmem_spec, vmem_spec, vmem_spec],
        out_specs=vmem_spec,
        compiler_params=pltpu.CompilerParams(
            vmem_limit_bytes=_vmem_limit_bytes(B, T, F, H),
        ),
    )(x, w_ih_t, w_hh_t, bias)
    return hid
    # TODO(synk): for large batch on v7x, add a leading 'parallel' grid axis over
    # batch chunks so both TensorCores run; unnecessary at these sizes.


# --------------------------- FeatureExtractor module ---------------------------

class FeatureExtractor:
    """JAX/Pallas port of agents/a2c/models.py::FeatureExtractor.

    Only the configuration actually exercised here (n_rnn_layers=1,
    bidirectional=False) is implemented.
    """

    def __init__(self, args, key):
        self.n_features = args.n_features
        self.n_hidden = args.n_hidden
        self.n_layers = args.n_rnn_layers
        self.bidirectional = args.bidirectional
        self.directions = args.rnn_directions
        assert self.n_layers == 1 and not self.bidirectional, (
            "Pallas port implements num_layers=1, unidirectional LSTM"
        )
        # TODO(synk): multi-layer / bidirectional stacking not implemented.

        H, F = self.n_hidden, self.n_features
        k = 1.0 / math.sqrt(H)
        k0, k1, k2, k3 = jax.random.split(key, 4)
        # PyTorch nn.LSTM default init: U(-1/sqrt(H), 1/sqrt(H)), gate order i,f,g,o.
        self.w_ih = jax.random.uniform(k0, (4 * H, F), jnp.float32, -k, k)
        self.w_hh = jax.random.uniform(k1, (4 * H, H), jnp.float32, -k, k)
        self.b_ih = jax.random.uniform(k2, (4 * H,), jnp.float32, -k, k)
        self.b_hh = jax.random.uniform(k3, (4 * H,), jnp.float32, -k, k)

        # Kernel-layout parameters, prepared ONCE at init (not per forward call):
        # transposed weights and summed bias.
        # TODO(synk): cast matmul operands to bf16 (f32 accumulate) on v6e/v7x
        # once exact 1e-5 parity with the f32 reference is no longer required.
        self.w_ih_t = jnp.transpose(self.w_ih).astype(jnp.float32)      # (F, 4H)
        self.w_hh_t = jnp.transpose(self.w_hh).astype(jnp.float32)      # (H, 4H)
        self.bias = (self.b_ih + self.b_hh).reshape(1, 4 * H).astype(jnp.float32)

    def forward(self, s, mode):
        if mode == 'batch':
            # s: (B, T, F)
            hid = lstm_pallas(s, self.w_ih_t, self.w_hh_t, self.bias)    # (B, H)
            # PyTorch: hid (num_layers*dirs=1, B, H).view(B, -1) == (B, H)
            lstm_output = hid.reshape(hid.shape[0], -1)
        else:
            # s: (T, F) -> unsqueeze(0) -> (1, T, F)
            hid = lstm_pallas(s[None, ...], self.w_ih_t, self.w_hh_t, self.bias)
            # PyTorch: hid (1, 1, H).squeeze(1) -> (1, H); flatten -> (H,)
            lstm_output = hid.reshape(-1)
        extract_states = lstm_output
        return (extract_states, lstm_output)


# --------------------------------- reference -----------------------------------

def lstm_reference(x_btf, w_ih, w_hh, b_ih, b_hh):
    """Pure-JAX reference LSTM (lax.scan) for correctness checking."""
    B, T, F = x_btf.shape
    H = w_hh.shape[1]

    def step(carry, x_t):
        h, c = carry
        gates = x_t @ w_ih.T + h @ w_hh.T + b_ih + b_hh
        i = jax.nn.sigmoid(gates[:, 0 * H:1 * H])
        f = jax.nn.sigmoid(gates[:, 1 * H:2 * H])
        g = jnp.tanh(gates[:, 2 * H:3 * H])
        o = jax.nn.sigmoid(gates[:, 3 * H:4 * H])
        c = f * c + i * g
        h = o * jnp.tanh(c)
        return (h, c), h

    h0 = jnp.zeros((B, H), jnp.float32)
    c0 = jnp.zeros((B, H), jnp.float32)
    (h_fin, _), _ = jax.lax.scan(step, (h0, c0), jnp.transpose(x_btf, (1, 0, 2)))
    return h_fin


# ----------------------------------- main ---------------------------------------

if __name__ == "__main__":
    args = SimpleNamespace(
        n_features=4,
        use_handcraft=0,
        n_hidden=32,
        n_rnn_layers=1,
        bidirectional=False,
        rnn_directions=1,
    )

    key = jax.random.PRNGKey(0)
    k_params, k_batch, k_single = jax.random.split(key, 3)

    model = FeatureExtractor(args, k_params)

    B, T, F = 2, 8, args.n_features
    s_batch = jax.random.normal(k_batch, (B, T, F), jnp.float32)
    s_single = jax.random.normal(k_single, (T, F), jnp.float32)

    # batch mode
    extract_b, lstm_out_b = model.forward(s_batch, 'batch')
    extract_b = jax.block_until_ready(extract_b)
    ref_b = lstm_reference(s_batch, model.w_ih, model.w_hh, model.b_ih, model.b_hh)
    assert extract_b.shape == (B, args.n_hidden)
    assert jnp.allclose(extract_b, ref_b, atol=1e-5, rtol=1e-5)

    # non-batch ("single") mode
    extract_s, lstm_out_s = model.forward(s_single, 'single')
    extract_s = jax.block_until_ready(extract_s)
    ref_s = lstm_reference(s_single[None], model.w_ih, model.w_hh,
                           model.b_ih, model.b_hh).reshape(-1)
    assert extract_s.shape == (args.n_hidden,)
    assert jnp.allclose(extract_s, ref_s, atol=1e-5, rtol=1e-5)

    print("KERNEL_OK")
</pallas_src>

<mosaic_0001>
module attributes {stable_mosaic.version = 11 : i64} {
  func.func @_lstm_seq_kernel(%arg0: memref<2x8x4xf32, #tpu.memory_space<vmem>>, %arg1: memref<4x128xf32, #tpu.memory_space<vmem>>, %arg2: memref<32x128xf32, #tpu.memory_space<vmem>>, %arg3: memref<1x128xf32, #tpu.memory_space<vmem>>, %arg4: memref<2x32xf32, #tpu.memory_space<vmem>>) attributes {dimension_semantics = [], scalar_prefetch = 0 : i64, scratch_operands = 0 : i64, tpu.core_type = #tpu.core_type<tc>} {
    %c0 = arith.constant 0 : index
    %c0_0 = arith.constant 0 : index
    %c0_1 = arith.constant 0 : index
    %0 = vector.load %arg0[%c0, %c0_0, %c0_1] : memref<2x8x4xf32, #tpu.memory_space<vmem>>, vector<2x8x4xf32>
    %1 = vector.shape_cast %0 : vector<2x8x4xf32> to vector<16x4xf32>
    %c0_2 = arith.constant 0 : index
    %c0_3 = arith.constant 0 : index
    %2 = vector.load %arg1[%c0_2, %c0_3] : memref<4x128xf32, #tpu.memory_space<vmem>>, vector<4x128xf32>
    %cst = arith.constant dense<0.000000e+00> : vector<16x128xf32>
    %3 = tpu.matmul %1, %2, %cst {dimension_numbers = #tpu.dot_dimension_numbers<[1], [0], [0], [1], [0, 0, 1, 1], [], []>} : vector<16x4xf32>, vector<4x128xf32>, vector<16x128xf32> -> vector<16x128xf32>
    %c0_4 = arith.constant 0 : index
    %c0_5 = arith.constant 0 : index
    %4 = vector.load %arg3[%c0_4, %c0_5] : memref<1x128xf32, #tpu.memory_space<vmem>>, vector<1x128xf32>
    %5 = vector.broadcast %4 : vector<1x128xf32> to vector<16x128xf32>
    %6 = arith.addf %3, %5 : vector<16x128xf32>
    %7 = vector.shape_cast %6 : vector<16x128xf32> to vector<2x8x128xf32>
    %c0_6 = arith.constant 0 : index
    %c0_7 = arith.constant 0 : index
    %8 = vector.load %arg2[%c0_6, %c0_7] : memref<32x128xf32, #tpu.memory_space<vmem>>, vector<32x128xf32>
    %cst_8 = arith.constant 0.000000e+00 : f32
    %9 = vector.broadcast %cst_8 : f32 to vector<2x32xf32>
    %cst_9 = arith.constant 0.000000e+00 : f32
    %10 = vector.broadcast %cst_9 : f32 to vector<2x32xf32>
    %11 = vector.extract_strided_slice %7 {offsets = [0, 0, 0], sizes = [2, 1, 128], strides = [1, 1, 1]} : vector<2x8x128xf32> to vector<2x1x128xf32>
    %12 = vector.shape_cast %11 : vector<2x1x128xf32> to vector<2x128xf32>
    %cst_10 = arith.constant dense<0.000000e+00> : vector<2x128xf32>
    %13 = tpu.matmul %9, %8, %cst_10 {dimension_numbers = #tpu.dot_dimension_numbers<[1], [0], [0], [1], [0, 0, 1, 1], [], []>} : vector<2x32xf32>, vector<32x128xf32>, vector<2x128xf32> -> vector<2x128xf32>
    %14 = arith.addf %12, %13 : vector<2x128xf32>
    %15 = arith.negf %14 : vector<2x128xf32>
    %16 = math.exp %15 : vector<2x128xf32>
    %cst_11 = arith.constant 1.000000e+00 : f32
    %17 = vector.broadcast %cst_11 : f32 to vector<2x128xf32>
    %18 = arith.addf %17, %16 : vector<2x128xf32>
    %19 = arith.divf %17, %18 : vector<2x128xf32>
    %20 = math.tanh %14 : vector<2x128xf32>
    %21 = vector.extract_strided_slice %19 {offsets = [0, 0], sizes = [2, 32], strides = [1, 1]} : vector<2x128xf32> to vector<2x32xf32>
    %22 = vector.extract_strided_slice %19 {offsets = [0, 32], sizes = [2, 32], strides = [1, 1]} : vector<2x128xf32> to vector<2x32xf32>
    %23 = vector.extract_strided_slice %20 {offsets = [0, 64], sizes = [2, 32], strides = [1, 1]} : vector<2x128xf32> to vector<2x32xf32>
    %24 = vector.extract_strided_slice %19 {offsets = [0, 96], sizes = [2, 32], strides = [1, 1]} : vector<2x128xf32> to vector<2x32xf32>
    %25 = arith.mulf %22, %10 : vector<2x32xf32>
    %26 = arith.mulf %21, %23 : vector<2x32xf32>
    %27 = arith.addf %25, %26 : vector<2x32xf32>
    %28 = math.tanh %27 : vector<2x32xf32>
    %29 = arith.mulf %24, %28 : vector<2x32xf32>
    %30 = vector.extract_strided_slice %7 {offsets = [0, 1, 0], sizes = [2, 1, 128], strides = [1, 1, 1]} : vector<2x8x128xf32> to vector<2x1x128xf32>
    %31 = vector.shape_cast %30 : vector<2x1x128xf32> to vector<2x128xf32>
    %cst_12 = arith.constant dense<0.000000e+00> : vector<2x128xf32>
    %32 = tpu.matmul %29, %8, %cst_12 {dimension_numbers = #tpu.dot_dimension_numbers<[1], [0], [0], [1], [0, 0, 1, 1], [], []>} : vector<2x32xf32>, vector<32x128xf32>, vector<2x128xf32> -> vector<2x128xf32>
    %33 = arith.addf %31, %32 : vector<2x128xf32>
    %34 = arith.negf %33 : vector<2x128xf32>
    %35 = math.exp %34 : vector<2x128xf32>
    %cst_13 = arith.constant 1.000000e+00 : f32
    %36 = vector.broadcast %cst_13 : f32 to vector<2x128xf32>
    %37 = arith.addf %36, %35 : vector<2x128xf32>
    %38 = arith.divf %36, %37 : vector<2x128xf32>
    %39 = math.tanh %33 : vector<2x128xf32>
    %40 = vector.extract_strided_slice %38 {offsets = [0, 0], sizes = [2, 32], strides = [1, 1]} : vector<2x128xf32> to vector<2x32xf32>
    %41 = vector.extract_strided_slice %38 {offsets = [0, 32], sizes = [2, 32], strides = [1, 1]} : vector<2x128xf32> to vector<2x32xf32>
    %42 = vector.extract_strided_slice %39 {offsets = [0, 64], sizes = [2, 32], strides = [1, 1]} : vector<2x128xf32> to vector<2x32xf32>
    %43 = vector.extract_strided_slice %38 {offsets = [0, 96], sizes = [2, 32], strides = [1, 1]} : vector<2x128xf32> to vector<2x32xf32>
    %44 = arith.mulf %41, %27 : vector<2x32xf32>
    %45 = arith.mulf %40, %42 : vector<2x32xf32>
    %46 = arith.addf %44, %45 : vector<2x32xf32>
    %47 = math.tanh %46 : vector<2x32xf32>
    %48 = arith.mulf %43, %47 : vector<2x32xf32>
    %49 = vector.extract_strided_slice %7 {offsets = [0, 2, 0], sizes = [2, 1, 128], strides = [1, 1, 1]} : vector<2x8x128xf32> to vector<2x1x128xf32>
    %50 = vector.shape_cast %49 : vector<2x1x128xf32> to vector<2x128xf32>
    %cst_14 = arith.constant dense<0.000000e+00> : vector<2x128xf32>
    %51 = tpu.matmul %48, %8, %cst_14 {dimension_numbers = #tpu.dot_dimension_numbers<[1], [0], [0], [1], [0, 0, 1, 1], [], []>} : vector<2x32xf32>, vector<32x128xf32>, vector<2x128xf32> -> vector<2x128xf32>
    %52 = arith.addf %50, %51 : vector<2x128xf32>
    %53 = arith.negf %52 : vector<2x128xf32>
    %54 = math.exp %53 : vector<2x128xf32>
    %cst_15 = arith.constant 1.000000e+00 : f32
    %55 = vector.broadcast %cst_15 : f32 to vector<2x128xf32>
    %56 = arith.addf %55, %54 : vector<2x128xf32>
    %57 = arith.divf %55, %56 : vector<2x128xf32>
    %58 = math.tanh %52 : vector<2x128xf32>
    %59 = vector.extract_strided_slice %57 {offsets = [0, 0], sizes = [2, 32], strides = [1, 1]} : vector<2x128xf32> to vector<2x32xf32>
    %60 = vector.extract_strided_slice %57 {offsets = [0, 32], sizes = [2, 32], strides = [1, 1]} : vector<2x128xf32> to vector<2x32xf32>
    %61 = vector.extract_strided_slice %58 {offsets = [0, 64], sizes = [2, 32], strides = [1, 1]} : vector<2x128xf32> to vector<2x32xf32>
    %62 = vector.extract_strided_slice %57 {offsets = [0, 96], sizes = [2, 32], strides = [1, 1]} : vector<2x128xf32> to vector<2x32xf32>
    %63 = arith.mulf %60, %46 : vector<2x32xf32>
    %64 = arith.mulf %59, %61 : vector<2x32xf32>
    %65 = arith.addf %63, %64 : vector<2x32xf32>
    %66 = math.tanh %65 : vector<2x32xf32>
    %67 = arith.mulf %62, %66 : vector<2x32xf32>
    %68 = vector.extract_strided_slice %7 {offsets = [0, 3, 0], sizes = [2, 1, 128], strides = [1, 1, 1]} : vector<2x8x128xf32> to vector<2x1x128xf32>
    %69 = vector.shape_cast %68 : vector<2x1x128xf32> to vector<2x128xf32>
    %cst_16 = arith.constant dense<0.000000e+00> : vector<2x128xf32>
    %70 = tpu.matmul %67, %8, %cst_16 {dimension_numbers = #tpu.dot_dimension_numbers<[1], [0], [0], [1], [0, 0, 1, 1], [], []>} : vector<2x32xf32>, vector<32x128xf32>, vector<2x128xf32> -> vector<2x128xf32>
    %71 = arith.addf %69, %70 : vector<2x128xf32>
    %72 = arith.negf %71 : vector<2x128xf32>
    %73 = math.exp %72 : vector<2x128xf32>
    %cst_17 = arith.constant 1.000000e+00 : f32
    %74 = vector.broadcast %cst_17 : f32 to vector<2x128xf32>
    %75 = arith.addf %74, %73 : vector<2x128xf32>
    %76 = arith.divf %74, %75 : vector<2x128xf32>
    %77 = math.tanh %71 : vector<2x128xf32>
    %78 = vector.extract_strided_slice %76 {offsets = [0, 0], sizes = [2, 32], strides = [1, 1]} : vector<2x128xf32> to vector<2x32xf32>
    %79 = vector.extract_strided_slice %76 {offsets = [0, 32], sizes = [2, 32], strides = [1, 1]} : vector<2x128xf32> to vector<2x32xf32>
    %80 = vector.extract_strided_slice %77 {offsets = [0, 64], sizes = [2, 32], strides = [1, 1]} : vector<2x128xf32> to vector<2x32xf32>
    %81 = vector.extract_strided_slice %76 {offsets = [0, 96], sizes = [2, 32], strides = [1, 1]} : vector<2x128xf32> to vector<2x32xf32>
    %82 = arith.mulf %79, %65 : vector<2x32xf32>
    %83 = arith.mulf %78, %80 : vector<2x32xf32>
    %84 = arith.addf %82, %83 : vector<2x32xf32>
    %85 = math.tanh %84 : vector<2x32xf32>
    %86 = arith.mulf %81, %85 : vector<2x32xf32>
    %87 = vector.extract_strided_slice %7 {offsets = [0, 4, 0], sizes = [2, 1, 128], strides = [1, 1, 1]} : vector<2x8x128xf32> to vector<2x1x128xf32>
    %88 = vector.shape_cast %87 : vector<2x1x128xf32> to vector<2x128xf32>
    %cst_18 = arith.constant dense<0.000000e+00> : vector<2x128xf32>
    %89 = tpu.matmul %86, %8, %cst_18 {dimension_numbers = #tpu.dot_dimension_numbers<[1], [0], [0], [1], [0, 0, 1, 1], [], []>} : vector<2x32xf32>, vector<32x128xf32>, vector<2x128xf32> -> vector<2x128xf32>
    %90 = arith.addf %88, %89 : vector<2x128xf32>
    %91 = arith.negf %90 : vector<2x128xf32>
    %92 = math.exp %91 : vector<2x128xf32>
    %cst_19 = arith.constant 1.000000e+00 : f32
    %93 = vector.broadcast %cst_19 : f32 to vector<2x128xf32>
    %94 = arith.addf %93, %92 : vector<2x128xf32>
    %95 = arith.divf %93, %94 : vector<2x128xf32>
    %96 = math.tanh %90 : vector<2x128xf32>
    %97 = vector.extract_strided_slice %95 {offsets = [0, 0], sizes = [2, 32], strides = [1, 1]} : vector<2x128xf32> to vector<2x32xf32>
    %98 = vector.extract_strided_slice %95 {offsets = [0, 32], sizes = [2, 32], strides = [1, 1]} : vector<2x128xf32> to vector<2x32xf32>
    %99 = vector.extract_strided_slice %96 {offsets = [0, 64], sizes = [2, 32], strides = [1, 1]} : vector<2x128xf32> to vector<2x32xf32>
    %100 = vector.extract_strided_slice %95 {offsets = [0, 96], sizes = [2, 32], strides = [1, 1]} : vector<2x128xf32> to vector<2x32xf32>
    %101 = arith.mulf %98, %84 : vector<2x32xf32>
    %102 = arith.mulf %97, %99 : vector<2x32xf32>
    %103 = arith.addf %101, %102 : vector<2x32xf32>
    %104 = math.tanh %103 : vector<2x32xf32>
    %105 = arith.mulf %100, %104 : vector<2x32xf32>
    %106 = vector.extract_strided_slice %7 {offsets = [0, 5, 0], sizes = [2, 1, 128], strides = [1, 1, 1]} : vector<2x8x128xf32> to vector<2x1x128xf32>
    %107 = vector.shape_cast %106 : vector<2x1x128xf32> to vector<2x128xf32>
    %cst_20 = arith.constant dense<0.000000e+00> : vector<2x128xf32>
    %108 = tpu.matmul %105, %8, %cst_20 {dimension_numbers = #tpu.dot_dimension_numbers<[1], [0], [0], [1], [0, 0, 1, 1], [], []>} : vector<2x32xf32>, vector<32x128xf32>, vector<2x128xf32> -> vector<2x128xf32>
    %109 = arith.addf %107, %108 : vector<2x128xf32>
    %110 = arith.negf %109 : vector<2x128xf32>
    %111 = math.exp %110 : vector<2x128xf32>
    %cst_21 = arith.constant 1.000000e+00 : f32
    %112 = vector.broadcast %cst_21 : f32 to vector<2x128xf32>
    %113 = arith.addf %112, %111 : vector<2x128xf32>
    %114 = arith.divf %112, %113 : vector<2x128xf32>
    %115 = math.tanh %109 : vector<2x128xf32>
    %116 = vector.extract_strided_slice %114 {offsets = [0, 0], sizes = [2, 32], strides = [1, 1]} : vector<2x128xf32> to vector<2x32xf32>
    %117 = vector.extract_strided_slice %114 {offsets = [0, 32], sizes = [2, 32], strides = [1, 1]} : vector<2x128xf32> to vector<2x32xf32>
    %118 = vector.extract_strided_slice %115 {offsets = [0, 64], sizes = [2, 32], strides = [1, 1]} : vector<2x128xf32> to vector<2x32xf32>
    %119 = vector.extract_strided_slice %114 {offsets = [0, 96], sizes = [2, 32], strides = [1, 1]} : vector<2x128xf32> to vector<2x32xf32>
    %120 = arith.mulf %117, %103 : vector<2x32xf32>
    %121 = arith.mulf %116, %118 : vector<2x32xf32>
    %122 = arith.addf %120, %121 : vector<2x32xf32>
    %123 = math.tanh %122 : vector<2x32xf32>
    %124 = arith.mulf %119, %123 : vector<2x32xf32>
    %125 = vector.extract_strided_slice %7 {offsets = [0, 6, 0], sizes = [2, 1, 128], strides = [1, 1, 1]} : vector<2x8x128xf32> to vector<2x1x128xf32>
    %126 = vector.shape_cast %125 : vector<2x1x128xf32> to vector<2x128xf32>
    %cst_22 = arith.constant dense<0.000000e+00> : vector<2x128xf32>
    %127 = tpu.matmul %124, %8, %cst_22 {dimension_numbers = #tpu.dot_dimension_numbers<[1], [0], [0], [1], [0, 0, 1, 1], [], []>} : vector<2x32xf32>, vector<32x128xf32>, vector<2x128xf32> -> vector<2x128xf32>
    %128 = arith.addf %126, %127 : vector<2x128xf32>
    %129 = arith.negf %128 : vector<2x128xf32>
    %130 = math.exp %129 : vector<2x128xf32>
    %cst_23 = arith.constant 1.000000e+00 : f32
    %131 = vector.broadcast %cst_23 : f32 to vector<2x128xf32>
    %132 = arith.addf %131, %130 : vector<2x128xf32>
    %133 = arith.divf %131, %132 : vector<2x128xf32>
    %134 = math.tanh %128 : vector<2x128xf32>
    %135 = vector.extract_strided_slice %133 {offsets = [0, 0], sizes = [2, 32], strides = [1, 1]} : vector<2x128xf32> to vector<2x32xf32>
    %136 = vector.extract_strided_slice %133 {offsets = [0, 32], sizes = [2, 32], strides = [1, 1]} : vector<2x128xf32> to vector<2x32xf32>
    %137 = vector.extract_strided_slice %134 {offsets = [0, 64], sizes = [2, 32], strides = [1, 1]} : vector<2x128xf32> to vector<2x32xf32>
    %138 = vector.extract_strided_slice %133 {offsets = [0, 96], sizes = [2, 32], strides = [1, 1]} : vector<2x128xf32> to vector<2x32xf32>
    %139 = arith.mulf %136, %122 : vector<2x32xf32>
    %140 = arith.mulf %135, %137 : vector<2x32xf32>
    %141 = arith.addf %139, %140 : vector<2x32xf32>
    %142 = math.tanh %141 : vector<2x32xf32>
    %143 = arith.mulf %138, %142 : vector<2x32xf32>
    %144 = vector.extract_strided_slice %7 {offsets = [0, 7, 0], sizes = [2, 1, 128], strides = [1, 1, 1]} : vector<2x8x128xf32> to vector<2x1x128xf32>
    %145 = vector.shape_cast %144 : vector<2x1x128xf32> to vector<2x128xf32>
    %cst_24 = arith.constant dense<0.000000e+00> : vector<2x128xf32>
    %146 = tpu.matmul %143, %8, %cst_24 {dimension_numbers = #tpu.dot_dimension_numbers<[1], [0], [0], [1], [0, 0, 1, 1], [], []>} : vector<2x32xf32>, vector<32x128xf32>, vector<2x128xf32> -> vector<2x128xf32>
    %147 = arith.addf %145, %146 : vector<2x128xf32>
    %148 = arith.negf %147 : vector<2x128xf32>
    %149 = math.exp %148 : vector<2x128xf32>
    %cst_25 = arith.constant 1.000000e+00 : f32
    %150 = vector.broadcast %cst_25 : f32 to vector<2x128xf32>
    %151 = arith.addf %150, %149 : vector<2x128xf32>
    %152 = arith.divf %150, %151 : vector<2x128xf32>
    %153 = math.tanh %147 : vector<2x128xf32>
    %154 = vector.extract_strided_slice %152 {offsets = [0, 0], sizes = [2, 32], strides = [1, 1]} : vector<2x128xf32> to vector<2x32xf32>
    %155 = vector.extract_strided_slice %152 {offsets = [0, 32], sizes = [2, 32], strides = [1, 1]} : vector<2x128xf32> to vector<2x32xf32>
    %156 = vector.extract_strided_slice %153 {offsets = [0, 64], sizes = [2, 32], strides = [1, 1]} : vector<2x128xf32> to vector<2x32xf32>
    %157 = vector.extract_strided_slice %152 {offsets = [0, 96], sizes = [2, 32], strides = [1, 1]} : vector<2x128xf32> to vector<2x32xf32>
    %158 = arith.mulf %155, %141 : vector<2x32xf32>
    %159 = arith.mulf %154, %156 : vector<2x32xf32>
    %160 = arith.addf %158, %159 : vector<2x32xf32>
    %161 = math.tanh %160 : vector<2x32xf32>
    %162 = arith.mulf %157, %161 : vector<2x32xf32>
    %c0_26 = arith.constant 0 : index
    %c0_27 = arith.constant 0 : index
    %163 = vector.load %arg4[%c0_26, %c0_27] : memref<2x32xf32, #tpu.memory_space<vmem>>, vector<2x32xf32>
    tpu.vector_store %arg4[%c0_26, %c0_27], %162 {strides = array<i32>} : memref<2x32xf32, #tpu.memory_space<vmem>>, vector<2x32xf32>,
    return
  }
}

</mosaic_0001>

<llo_original>
// kernel: lstm_pallas.1
$region0: #{lstm_pallas.1}
  #allocation0 [shape = 'u32[]', space=smem, size = 0x4, offset = 0x4, fixed_abs, tag = 'smem constant byte address 0x4 - core index']
  #allocation1 [shape = 'u32[72,128]{1,0:T(1,128)}', space=vmem, size = 0x9000, scoped, tag = 'internal scratch']
  %s0 = inlined_call_operand.vmem [shape: f32[2,8,4], index: 0, kind: input, shape index: {}]
  %s1 = inlined_call_operand.vmem [shape: f32[4,128], index: 1, kind: input, shape index: {}]
  %s2 = inlined_call_operand.hbm [shape: f32[32,128], index: 2, kind: input, shape index: {}]
  %s3 = inlined_call_operand.vmem [shape: f32[1,128], index: 3, kind: input, shape index: {}]
  %s4 = inlined_call_operand.hbm [shape: f32[2,32], index: 4, kind: output, shape index: {}]
  %s5 = sld [smem:[#allocation0]]
  $region30: #{lstm_pallas.1} parent=0
    _
  %s7 = ssub.s32 1, %s5
  %s8 = scalar_select 0, %s7, %s5
  $region1: #{lstm_pallas.1} parent=0
    #allocation2 [shape = 'u8[16384]{0}', space=vmem, size = 0x4000, scoped, tag = 'input window, operand 2, single buffered']
    #allocation3 [shape = 's32[1]{0}', space=sflag, size = 0x4, scoped, tag = 'scoped memory for lstm_pallas.1']
    #allocation4 [shape = 's32[1]{0}', space=sflag, size = 0x4, scoped, tag = 'scoped memory for lstm_pallas.1']
    #allocation5 [shape = 'u8[1024]{0}', space=vmem, size = 0x400, scoped, tag = 'output window, operand 0, single buffered']
    %9 = vsyncpa [#allocation3], 0
    %10 = vsyncpa [#allocation4], 0
    // Predicated region
    $region2: #{lstm_pallas.1} parent=1 // pred_check
      _
    $region3: #{lstm_pallas.1} parent=1 // pred_check_branch
      %12 = sbr.rel (0) target = $region5
    $region4: #{lstm_pallas.1} parent=1 // pred_region
      _
    $region5: #{lstm_pallas.1} parent=1 // pred_fallthru
      _
    // Predicated region
    $region6: #{lstm_pallas.1} parent=1 // pred_check
      _
    $region7: #{lstm_pallas.1} parent=1 // pred_check_branch
      %14 = sbr.rel (0) target = $region9
    $region8: #{lstm_pallas.1} parent=1 // pred_region
      _
    $region9: #{lstm_pallas.1} parent=1 // pred_fallthru
      _
    // Predicated region
    $region10: #{lstm_pallas.1} parent=1 // pred_check
      _
    $region11: #{lstm_pallas.1} parent=1 // pred_check_branch
      %16 = sbr.rel (0) target = $region13
    $region12: #{lstm_pallas.1} parent=1 // pred_region
      %18 = vsyncadd [#allocation3], 0
      %s19 = sshll.u32 %s2, 4
      %s20 = int_to_ptr.hbm [resolvable:$true] %s19
      %s21 = sshll.u32 [#allocation2], 4
      %s22 = int_to_ptr.vmem [resolvable:$true] %s21
      %27 = dma.hbm_to_vmem [thread:$0]  %s20, 512, %s22, [#allocation3], 128, 128, 8
    $region13: #{lstm_pallas.1} parent=1 // pred_fallthru
      _
    // Predicated region
    $region14: #{lstm_pallas.1} parent=1 // pred_check
      _
    $region15: #{lstm_pallas.1} parent=1 // pred_check_branch
      %29 = sbr.rel (0) target = $region17
    $region16: #{lstm_pallas.1} parent=1 // pred_region
      _
    $region17: #{lstm_pallas.1} parent=1 // pred_fallthru
      _
    // Predicated region
    $region18: #{lstm_pallas.1} parent=1 // pred_check
      _
    $region19: #{lstm_pallas.1} parent=1 // pred_check_branch
      %31 = sbr.rel (0) target = $region21
    $region20: #{lstm_pallas.1} parent=1 // pred_region
      %33 = dma.done [#allocation3], 512
    $region21: #{lstm_pallas.1} parent=1 // pred_fallthru
      _
    %v34 = vld [vmem:[%s0] sm:$0xff]
    %v35 = vld [vmem:[%s0 + $0x8] sm:$0xff]
    %v36 = vld [vmem:[%s1] sm:$0xf]
    %v37 = vld [vmem:[%s3] sm:$0x1]
    %v39 = vperm.slane %v37, 0
    %vm41 = vcmask 31744
    %v43 = vsel %vm41, %v34, 0
    %v46 = vsel %vm41, %v35, 0
    %vm48 = vcmask 1043456
    %v50 = vsel %vm48, %v36, 0
    %52 = vmatpush.msra.mxu0 0.0
    %53 = vmatpush.msra.mxu0 0.0
    %54 = vmatpush.msra.mxu0 0.0
    %55 = vmatpush.msra.mxu0 0.0
    %56 = vmatpush.msra.mxu0 0.0
    %57 = vmatpush.msra.mxu0 0.0
    %58 = vmatpush.msra.mxu0 0.0
    %59 = vmatpush.msra.mxu0 0.0
    %60 = vmatpush.msra.mxu0 0.0
    %61 = vmatpush.msra.mxu0 0.0
    %62 = vmatpush.msra.mxu0 0.0
    %63 = vmatpush.msra.mxu0 0.0
    %64 = vmatpush.msra.mxu0 0.0
    %65 = vmatpush.msra.mxu0 0.0
    %66 = vmatpush.msra.mxu0 0.0
    %67 = vmatpush.msra.mxu0 %v50
    %68 = vmatmul.f32.gmra.mxu0 %v43
    %v69 = vpop.f32.mrf.mxu0
    %v70 = vadd.f32 %v39, %v69
    %71 = vmatmul.f32.gmra.mxu0 %v46
    %v72 = vpop.f32.mrf.mxu0
    %v73 = vadd.f32 %v39, %v72
    %74 = vdwg.mxu0
    %v75 = vld [vmem:[#allocation2] sm:$0xff]
    %v76 = vld [vmem:[#allocation2 + $0x8] sm:$0xff]
    %v77 = vld [vmem:[#allocation2 + $0x10] sm:$0xff]
    %v78 = vld [vmem:[#allocation2 + $0x18] sm:$0xff]
    %vm79 = vcmask 261120
    %v81 = vsel %vm79, 0.0, 0
    %83 = vmatpush.msra.mxu0 0.0
    %84 = vmatpush.msra.mxu0 0.0
    %85 = vmatpush.msra.mxu0 0.0
    %86 = vmatpush.msra.mxu0 0.0
    %87 = vmatpush.msra.mxu0 0.0
    %88 = vmatpush.msra.mxu0 0.0
    %89 = vmatpush.msra.mxu0 0.0
    %90 = vmatpush.msra.mxu0 0.0
    %91 = vmatpush.msra.mxu0 0.0
    %92 = vmatpush.msra.mxu0 0.0
    %93 = vmatpush.msra.mxu0 0.0
    %94 = vmatpush.msra.mxu0 0.0
    %95 = vmatpush.msra.mxu0 %v78
    %96 = vmatpush.msra.mxu0 %v77
    %97 = vmatpush.msra.mxu0 %v76
    %98 = vmatpush.msra.mxu0 %v75
    %99 = vmatmul.f32.gmra.mxu0 %v81
    %v100 = vpop.f32.mrf.mxu0
    %v101 = vadd.f32 0.0, %v100
    %102 = vdwg.mxu0
    %v104 = vrot.slane %v101, 1
    %v107 = vadd.f32 %v70, %v101
    %v108 = vadd.f32 %v73, %v104
    %v109 = vxor.u32 %v107, 2147483648
    %v110 = vxor.u32 %v108, 2147483648
    %v111 = vmul.f32 %v109, 1.442695
    %v112 = vpow.pop %v111
    %v113 = vmul.f32 %v110, 1.442695
    %v114 = vpow.pop %v113
    %v115 = vadd.f32 %v112, 1.0
    %v116 = vadd.f32 %v114, 1.0
    %v117 = vrcp.pop %v115
    %v118 = vmul.f32 %v115, %v117
    %v119 = vsub.f32 1.0, %v118
    %v120 = vmul.f32 %v117, %v119
    %v121 = vadd.f32 %v117, %v120
    %vm122 = vweird.f32 %v115
    %vm123 = vweird.f32 %v117
    %vm124 = vmor %vm122, %vm123
    %v125 = vsel %vm124, %v117, %v121
    %v126 = vand.u32 2147483647, %v115
    %vm127 = vcmp.eq.f32.partialorder %v126, 8.507059e+37
    %v128 = vand.u32 %v115, 2147483648
    %v129 = vor.u32 1.1754944e-38, %v128
    %v130 = vsel %vm127, %v129, %v125
    %v131 = vmul.f32 1.0, %v130
    %v132 = vrcp.pop %v116
    %v133 = vmul.f32 %v116, %v132
    %v134 = vsub.f32 1.0, %v133
    %v135 = vmul.f32 %v132, %v134
    %v136 = vadd.f32 %v132, %v135
    %vm137 = vweird.f32 %v116
    %vm138 = vweird.f32 %v132
    %vm139 = vmor %vm137, %vm138
    %v140 = vsel %vm139, %v132, %v136
    %v141 = vand.u32 2147483647, %v116
    %vm142 = vcmp.eq.f32.partialorder %v141, 8.507059e+37
    %v143 = vand.u32 %v116, 2147483648
    %v144 = vor.u32 1.1754944e-38, %v143
    %v145 = vsel %vm142, %v144, %v140
    %v146 = vmul.f32 1.0, %v145
    %v147 = vtanh.pop %v107
    %v148 = vtanh.pop %v108
    %v149 = vmul.f32 %v131, 0.0
    %v150 = vmul.f32 %v146, 0.0
    %153 = vrot.lane.b32.xlu0 %v147, 64
    %v154 = vpop.permute.xlu0 %153
    %155 = vrot.lane.b32.xlu0 %v148, 64
    %v156 = vpop.permute.xlu0 %155
    %v159 = vmul.f32 %v131, %v154
    %v160 = vmul.f32 %v146, %v156
    %163 = vrot.lane.b32.xlu0 %v159, 32
    %v164 = vpop.permute.xlu0 %163
    %165 = vrot.lane.b32.xlu0 %v160, 32
    %v166 = vpop.permute.xlu0 %165
    %v169 = vadd.f32 %v149, %v164
    %v170 = vadd.f32 %v150, %v166
    %v171 = vtanh.pop %v169
    %v172 = vtanh.pop %v170
    %175 = vrot.lane.b32.xlu0 %v171, 64
    %v176 = vpop.permute.xlu0 %175
    %177 = vrot.lane.b32.xlu0 %v172, 64
    %v178 = vpop.permute.xlu0 %177
    %v181 = vmul.f32 %v131, %v176
    %v182 = vmul.f32 %v146, %v178
    %v185 = vrot.slane %v182, 7
    %vm186 = vcmask 1041409
    %v187 = vsel %vm186, %v185, %v181
    %188 = vrot.lane.b32.xlu0 %v187, 32
    %v189 = vpop.permute.xlu0 %188
    %v190 = vsel %vm79, %v189, 0
    %192 = vmatpush.msra.mxu0 0.0
    %193 = vmatpush.msra.mxu0 0.0
    %194 = vmatpush.msra.mxu0 0.0
    %195 = vmatpush.msra.mxu0 0.0
    %196 = vmatpush.msra.mxu0 0.0
    %197 = vmatpush.msra.mxu0 0.0
    %198 = vmatpush.msra.mxu0 0.0
    %199 = vmatpush.msra.mxu0 0.0
    %200 = vmatpush.msra.mxu0 0.0
    %201 = vmatpush.msra.mxu0 0.0
    %202 = vmatpush.msra.mxu0 0.0
    %203 = vmatpush.msra.mxu0 0.0
    %204 = vmatpush.msra.mxu0 %v78
    %205 = vmatpush.msra.mxu0 %v77
    %206 = vmatpush.msra.mxu0 %v76
    %207 = vmatpush.msra.mxu0 %v75
    %208 = vmatmul.f32.gmra.mxu0 %v190
    %v209 = vpop.f32.mrf.mxu0
    %v210 = vadd.f32 0.0, %v209
    %211 = vdwg.mxu0
    %v213 = vrot.slane %v210, 7
    %v216 = vadd.f32 %v70, %v213
    %v217 = vadd.f32 %v73, %v210
    %v218 = vxor.u32 %v216, 2147483648
    %v219 = vxor.u32 %v217, 2147483648
    %v220 = vmul.f32 %v218, 1.442695
    %v221 = vpow.pop %v220
    %v222 = vmul.f32 %v219, 1.442695
    %v223 = vpow.pop %v222
    %v224 = vadd.f32 %v221, 1.0
    %v225 = vadd.f32 %v223, 1.0
    %v226 = vrcp.pop %v224
    %v227 = vmul.f32 %v224, %v226
    %v228 = vsub.f32 1.0, %v227
    %v229 = vmul.f32 %v226, %v228
    %v230 = vadd.f32 %v226, %v229
    %vm231 = vweird.f32 %v224
    %vm232 = vweird.f32 %v226
    %vm233 = vmor %vm231, %vm232
    %v234 = vsel %vm233, %v226, %v230
    %v235 = vand.u32 2147483647, %v224
    %vm236 = vcmp.eq.f32.partialorder %v235, 8.507059e+37
    %v237 = vand.u32 %v224, 2147483648
    %v238 = vor.u32 1.1754944e-38, %v237
    %v239 = vsel %vm236, %v238, %v234
    %v240 = vmul.f32 1.0, %v239
    %v241 = vrcp.pop %v225
    %v242 = vmul.f32 %v225, %v241
    %v243 = vsub.f32 1.0, %v242
    %v244 = vmul.f32 %v241, %v243
    %v245 = vadd.f32 %v241, %v244
    %vm246 = vweird.f32 %v225
    %vm247 = vweird.f32 %v241
    %vm248 = vmor %vm246, %vm247
    %v249 = vsel %vm248, %v241, %v245
    %v250 = vand.u32 2147483647, %v225
    %vm251 = vcmp.eq.f32.partialorder %v250, 8.507059e+37
    %v252 = vand.u32 %v225, 2147483648
    %v253 = vor.u32 1.1754944e-38, %v252
    %v254 = vsel %vm251, %v253, %v249
    %v255 = vmul.f32 1.0, %v254
    %v256 = vtanh.pop %v216
    %v257 = vtanh.pop %v217
    %v260 = vrot.slane %v169, 7
    %v261 = vrot.slane %v170, 7
    %v264 = vmul.f32 %v240, %v260
    %v265 = vmul.f32 %v255, %v261
    %268 = vrot.lane.b32.xlu0 %v256, 64
    %v269 = vpop.permute.xlu0 %268
    %270 = vrot.lane.b32.xlu0 %v257, 64
    %v271 = vpop.permute.xlu0 %270
    %v274 = vmul.f32 %v240, %v269
    %v275 = vmul.f32 %v255, %v271
    %278 = vrot.lane.b32.xlu0 %v274, 32
    %v279 = vpop.permute.xlu0 %278
    %280 = vrot.lane.b32.xlu0 %v275, 32
    %v281 = vpop.permute.xlu0 %280
    %v284 = vadd.f32 %v264, %v279
    %v285 = vadd.f32 %v265, %v281
    %v286 = vtanh.pop %v284
    %v287 = vtanh.pop %v285
    %290 = vrot.lane.b32.xlu0 %v286, 64
    %v291 = vpop.permute.xlu0 %290
    %292 = vrot.lane.b32.xlu0 %v287, 64
    %v293 = vpop.permute.xlu0 %292
    %v296 = vmul.f32 %v240, %v291
    %v297 = vmul.f32 %v255, %v293
    %v300 = vrot.slane %v296, 1
    %v301 = vsel %vm186, %v297, %v300
    %302 = vrot.lane.b32.xlu0 %v301, 32
    %v303 = vpop.permute.xlu0 %302
    %v304 = vsel %vm79, %v303, 0
    %306 = vmatpush.msra.mxu0 0.0
    %307 = vmatpush.msra.mxu0 0.0
    %308 = vmatpush.msra.mxu0 0.0
    %309 = vmatpush.msra.mxu0 0.0
    %310 = vmatpush.msra.mxu0 0.0
    %311 = vmatpush.msra.mxu0 0.0
    %312 = vmatpush.msra.mxu0 0.0
    %313 = vmatpush.msra.mxu0 0.0
    %314 = vmatpush.msra.mxu0 0.0
    %315 = vmatpush.msra.mxu0 0.0
    %316 = vmatpush.msra.mxu0 0.0
    %317 = vmatpush.msra.mxu0 0.0
    %318 = vmatpush.msra.mxu0 %v78
    %319 = vmatpush.msra.mxu0 %v77
    %320 = vmatpush.msra.mxu0 %v76
    %321 = vmatpush.msra.mxu0 %v75
    %322 = vmatmul.f32.gmra.mxu0 %v304
    %v323 = vpop.f32.mrf.mxu0
    %v324 = vadd.f32 0.0, %v323
    %325 = vdwg.mxu0
    %v327 = vrot.slane %v324, 6
    %v328 = vrot.slane %v324, 7
    %v331 = vadd.f32 %v70, %v327
    %v332 = vadd.f32 %v73, %v328
    %v333 = vxor.u32 %v331, 2147483648
    %v334 = vxor.u32 %v332, 2147483648
    %v335 = vmul.f32 %v333, 1.442695
    %v336 = vpow.pop %v335
    %v337 = vmul.f32 %v334, 1.442695
    %v338 = vpow.pop %v337
    %v339 = vadd.f32 %v336, 1.0
    %v340 = vadd.f32 %v338, 1.0
    %v341 = vrcp.pop %v339
    %v342 = vmul.f32 %v339, %v341
    %v343 = vsub.f32 1.0, %v342
    %v344 = vmul.f32 %v341, %v343
    %v345 = vadd.f32 %v341, %v344
    %vm346 = vweird.f32 %v339
    %vm347 = vweird.f32 %v341
    %vm348 = vmor %vm346, %vm347
    %v349 = vsel %vm348, %v341, %v345
    %v350 = vand.u32 2147483647, %v339
    %vm351 = vcmp.eq.f32.partialorder %v350, 8.507059e+37
    %v352 = vand.u32 %v339, 2147483648
    %v353 = vor.u32 1.1754944e-38, %v352
    %v354 = vsel %vm351, %v353, %v349
    %v355 = vmul.f32 1.0, %v354
    %v356 = vrcp.pop %v340
    %v357 = vmul.f32 %v340, %v356
    %v358 = vsub.f32 1.0, %v357
    %v359 = vmul.f32 %v356, %v358
    %v360 = vadd.f32 %v356, %v359
    %vm361 = vweird.f32 %v340
    %vm362 = vweird.f32 %v356
    %vm363 = vmor %vm361, %vm362
    %v364 = vsel %vm363, %v356, %v360
    %v365 = vand.u32 2147483647, %v340
    %vm366 = vcmp.eq.f32.partialorder %v365, 8.507059e+37
    %v367 = vand.u32 %v340, 2147483648
    %v368 = vor.u32 1.1754944e-38, %v367
    %v369 = vsel %vm366, %v368, %v364
    %v370 = vmul.f32 1.0, %v369
    %v371 = vtanh.pop %v331
    %v372 = vtanh.pop %v332
    %v375 = vrot.slane %v284, 7
    %v376 = vrot.slane %v285, 7
    %v379 = vmul.f32 %v355, %v375
    %v380 = vmul.f32 %v370, %v376
    %383 = vrot.lane.b32.xlu0 %v371, 64
    %v384 = vpop.permute.xlu0 %383
    %385 = vrot.lane.b32.xlu0 %v372, 64
    %v386 = vpop.permute.xlu0 %385
    %v389 = vmul.f32 %v355, %v384
    %v390 = vmul.f32 %v370, %v386
    %393 = vrot.lane.b32.xlu0 %v389, 32
    %v394 = vpop.permute.xlu0 %393
    %395 = vrot.lane.b32.xlu0 %v390, 32
    %v396 = vpop.permute.xlu0 %395
    %v399 = vadd.f32 %v379, %v394
    %v400 = vadd.f32 %v380, %v396
    %v401 = vtanh.pop %v399
    %v402 = vtanh.pop %v400
    %405 = vrot.lane.b32.xlu0 %v401, 64
    %v406 = vpop.permute.xlu0 %405
    %407 = vrot.lane.b32.xlu0 %v402, 64
    %v408 = vpop.permute.xlu0 %407
    %v411 = vmul.f32 %v355, %v406
    %v412 = vmul.f32 %v370, %v408
    %v415 = vrot.slane %v411, 2
    %v416 = vrot.slane %v412, 1
    %v417 = vsel %vm186, %v416, %v415
    %418 = vrot.lane.b32.xlu0 %v417, 32
    %v419 = vpop.permute.xlu0 %418
    %v420 = vsel %vm79, %v419, 0
    %422 = vmatpush.msra.mxu0 0.0
    %423 = vmatpush.msra.mxu0 0.0
    %424 = vmatpush.msra.mxu0 0.0
    %425 = vmatpush.msra.mxu0 0.0
    %426 = vmatpush.msra.mxu0 0.0
    %427 = vmatpush.msra.mxu0 0.0
    %428 = vmatpush.msra.mxu0 0.0
    %429 = vmatpush.msra.mxu0 0.0
    %430 = vmatpush.msra.mxu0 0.0
    %431 = vmatpush.msra.mxu0 0.0
    %432 = vmatpush.msra.mxu0 0.0
    %433 = vmatpush.msra.mxu0 0.0
    %434 = vmatpush.msra.mxu0 %v78
    %435 = vmatpush.msra.mxu0 %v77
    %436 = vmatpush.msra.mxu0 %v76
    %437 = vmatpush.msra.mxu0 %v75
    %438 = vmatmul.f32.gmra.mxu0 %v420
    %v439 = vpop.f32.mrf.mxu0
    %v440 = vadd.f32 0.0, %v439
    %441 = vdwg.mxu0
    %v443 = vrot.slane %v440, 5
    %v444 = vrot.slane %v440, 6
    %v447 = vadd.f32 %v70, %v443
    %v448 = vadd.f32 %v73, %v444
    %v449 = vxor.u32 %v447, 2147483648
    %v450 = vxor.u32 %v448, 2147483648
    %v451 = vmul.f32 %v449, 1.442695
    %v452 = vpow.pop %v451
    %v453 = vmul.f32 %v450, 1.442695
    %v454 = vpow.pop %v453
    %v455 = vadd.f32 %v452, 1.0
    %v456 = vadd.f32 %v454, 1.0
    %v457 = vrcp.pop %v455
    %v458 = vmul.f32 %v455, %v457
    %v459 = vsub.f32 1.0, %v458
    %v460 = vmul.f32 %v457, %v459
    %v461 = vadd.f32 %v457, %v460
    %vm462 = vweird.f32 %v455
    %vm463 = vweird.f32 %v457
    %vm464 = vmor %vm462, %vm463
    %v465 = vsel %vm464, %v457, %v461
    %v466 = vand.u32 2147483647, %v455
    %vm467 = vcmp.eq.f32.partialorder %v466, 8.507059e+37
    %v468 = vand.u32 %v455, 2147483648
    %v469 = vor.u32 1.1754944e-38, %v468
    %v470 = vsel %vm467, %v469, %v465
    %v471 = vmul.f32 1.0, %v470
    %v472 = vrcp.pop %v456
    %v473 = vmul.f32 %v456, %v472
    %v474 = vsub.f32 1.0, %v473
    %v475 = vmul.f32 %v472, %v474
    %v476 = vadd.f32 %v472, %v475
    %vm477 = vweird.f32 %v456
    %vm478 = vweird.f32 %v472
    %vm479 = vmor %vm477, %vm478
    %v480 = vsel %vm479, %v472, %v476
    %v481 = vand.u32 2147483647, %v456
    %vm482 = vcmp.eq.f32.partialorder %v481, 8.507059e+37
    %v483 = vand.u32 %v456, 2147483648
    %v484 = vor.u32 1.1754944e-38, %v483
    %v485 = vsel %vm482, %v484, %v480
    %v486 = vmul.f32 1.0, %v485
    %v487 = vtanh.pop %v447
    %v488 = vtanh.pop %v448
    %v491 = vrot.slane %v399, 7
    %v492 = vrot.slane %v400, 7
    %v495 = vmul.f32 %v471, %v491
    %v496 = vmul.f32 %v486, %v492
    %499 = vrot.lane.b32.xlu0 %v487, 64
    %v500 = vpop.permute.xlu0 %499
    %501 = vrot.lane.b32.xlu0 %v488, 64
    %v502 = vpop.permute.xlu0 %501
    %v505 = vmul.f32 %v471, %v500
    %v506 = vmul.f32 %v486, %v502
    %509 = vrot.lane.b32.xlu0 %v505, 32
    %v510 = vpop.permute.xlu0 %509
    %511 = vrot.lane.b32.xlu0 %v506, 32
    %v512 = vpop.permute.xlu0 %511
    %v515 = vadd.f32 %v495, %v510
    %v516 = vadd.f32 %v496, %v512
    %v517 = vtanh.pop %v515
    %v518 = vtanh.pop %v516
    %521 = vrot.lane.b32.xlu0 %v517, 64
    %v522 = vpop.permute.xlu0 %521
    %523 = vrot.lane.b32.xlu0 %v518, 64
    %v524 = vpop.permute.xlu0 %523
    %v527 = vmul.f32 %v471, %v522
    %v528 = vmul.f32 %v486, %v524
    %v531 = vrot.slane %v527, 3
    %v532 = vrot.slane %v528, 2
    %v533 = vsel %vm186, %v532, %v531
    %534 = vrot.lane.b32.xlu0 %v533, 32
    %v535 = vpop.permute.xlu0 %534
    %v536 = vsel %vm79, %v535, 0
    %538 = vmatpush.msra.mxu0 0.0
    %539 = vmatpush.msra.mxu0 0.0
    %540 = vmatpush.msra.mxu0 0.0
    %541 = vmatpush.msra.mxu0 0.0
    %542 = vmatpush.msra.mxu0 0.0
    %543 = vmatpush.msra.mxu0 0.0
    %544 = vmatpush.msra.mxu0 0.0
    %545 = vmatpush.msra.mxu0 0.0
    %546 = vmatpush.msra.mxu0 0.0
    %547 = vmatpush.msra.mxu0 0.0
    %548 = vmatpush.msra.mxu0 0.0
    %549 = vmatpush.msra.mxu0 0.0
    %550 = vmatpush.msra.mxu0 %v78
    %551 = vmatpush.msra.mxu0 %v77
    %552 = vmatpush.msra.mxu0 %v76
    %553 = vmatpush.msra.mxu0 %v75
    %554 = vmatmul.f32.gmra.mxu0 %v536
    %v555 = vpop.f32.mrf.mxu0
    %v556 = vadd.f32 0.0, %v555
    %557 = vdwg.mxu0
    %v559 = vrot.slane %v556, 4
    %v560 = vrot.slane %v556, 5
    %v563 = vadd.f32 %v70, %v559
    %v564 = vadd.f32 %v73, %v560
    %v565 = vxor.u32 %v563, 2147483648
    %v566 = vxor.u32 %v564, 2147483648
    %v567 = vmul.f32 %v565, 1.442695
    %v568 = vpow.pop %v567
    %v569 = vmul.f32 %v566, 1.442695
    %v570 = vpow.pop %v569
    %v571 = vadd.f32 %v568, 1.0
    %v572 = vadd.f32 %v570, 1.0
    %v573 = vrcp.pop %v571
    %v574 = vmul.f32 %v571, %v573
    %v575 = vsub.f32 1.0, %v574
    %v576 = vmul.f32 %v573, %v575
    %v577 = vadd.f32 %v573, %v576
    %vm578 = vweird.f32 %v571
    %vm579 = vweird.f32 %v573
    %vm580 = vmor %vm578, %vm579
    %v581 = vsel %vm580, %v573, %v577
    %v582 = vand.u32 2147483647, %v571
    %vm583 = vcmp.eq.f32.partialorder %v582, 8.507059e+37
    %v584 = vand.u32 %v571, 2147483648
    %v585 = vor.u32 1.1754944e-38, %v584
    %v586 = vsel %vm583, %v585, %v581
    %v587 = vmul.f32 1.0, %v586
    %v588 = vrcp.pop %v572
    %v589 = vmul.f32 %v572, %v588
    %v590 = vsub.f32 1.0, %v589
    %v591 = vmul.f32 %v588, %v590
    %v592 = vadd.f32 %v588, %v591
    %vm593 = vweird.f32 %v572
    %vm594 = vweird.f32 %v588
    %vm595 = vmor %vm593, %vm594
    %v596 = vsel %vm595, %v588, %v592
    %v597 = vand.u32 2147483647, %v572
    %vm598 = vcmp.eq.f32.partialorder %v597, 8.507059e+37
    %v599 = vand.u32 %v572, 2147483648
    %v600 = vor.u32 1.1754944e-38, %v599
    %v601 = vsel %vm598, %v600, %v596
    %v602 = vmul.f32 1.0, %v601
    %v603 = vtanh.pop %v563
    %v604 = vtanh.pop %v564
    %v607 = vrot.slane %v515, 7
    %v608 = vrot.slane %v516, 7
    %v611 = vmul.f32 %v587, %v607
    %v612 = vmul.f32 %v602, %v608
    %615 = vrot.lane.b32.xlu0 %v603, 64
    %v616 = vpop.permute.xlu0 %615
    %617 = vrot.lane.b32.xlu0 %v604, 64
    %v618 = vpop.permute.xlu0 %617
    %v621 = vmul.f32 %v587, %v616
    %v622 = vmul.f32 %v602, %v618
    %625 = vrot.lane.b32.xlu0 %v621, 32
    %v626 = vpop.permute.xlu0 %625
    %627 = vrot.lane.b32.xlu0 %v622, 32
    %v628 = vpop.permute.xlu0 %627
    %v631 = vadd.f32 %v611, %v626
    %v632 = vadd.f32 %v612, %v628
    %v633 = vtanh.pop %v631
    %v634 = vtanh.pop %v632
    %637 = vrot.lane.b32.xlu0 %v633, 64
    %v638 = vpop.permute.xlu0 %637
    %639 = vrot.lane.b32.xlu0 %v634, 64
    %v640 = vpop.permute.xlu0 %639
    %v643 = vmul.f32 %v587, %v638
    %v644 = vmul.f32 %v602, %v640
    %v647 = vrot.slane %v643, 4
    %v648 = vrot.slane %v644, 3
    %v649 = vsel %vm186, %v648, %v647
    %650 = vrot.lane.b32.xlu0 %v649, 32
    %v651 = vpop.permute.xlu0 %650
    %v652 = vsel %vm79, %v651, 0
    %654 = vmatpush.msra.mxu0 0.0
    %655 = vmatpush.msra.mxu0 0.0
    %656 = vmatpush.msra.mxu0 0.0
    %657 = vmatpush.msra.mxu0 0.0
    %658 = vmatpush.msra.mxu0 0.0
    %659 = vmatpush.msra.mxu0 0.0
    %660 = vmatpush.msra.mxu0 0.0
    %661 = vmatpush.msra.mxu0 0.0
    %662 = vmatpush.msra.mxu0 0.0
    %663 = vmatpush.msra.mxu0 0.0
    %664 = vmatpush.msra.mxu0 0.0
    %665 = vmatpush.msra.mxu0 0.0
    %666 = vmatpush.msra.mxu0 %v78
    %667 = vmatpush.msra.mxu0 %v77
    %668 = vmatpush.msra.mxu0 %v76
    %669 = vmatpush.msra.mxu0 %v75
    %670 = vmatmul.f32.gmra.mxu0 %v652
    %v671 = vpop.f32.mrf.mxu0
    %v672 = vadd.f32 0.0, %v671
    %673 = vdwg.mxu0
    %v675 = vrot.slane %v672, 3
    %v676 = vrot.slane %v672, 4
    %v679 = vadd.f32 %v70, %v675
    %v680 = vadd.f32 %v73, %v676
    %v681 = vxor.u32 %v679, 2147483648
    %v682 = vxor.u32 %v680, 2147483648
    %v683 = vmul.f32 %v681, 1.442695
    %v684 = vpow.pop %v683
    %v685 = vmul.f32 %v682, 1.442695
    %v686 = vpow.pop %v685
    %v687 = vadd.f32 %v684, 1.0
    %v688 = vadd.f32 %v686, 1.0
    %v689 = vrcp.pop %v687
    %v690 = vmul.f32 %v687, %v689
    %v691 = vsub.f32 1.0, %v690
    %v692 = vmul.f32 %v689, %v691
    %v693 = vadd.f32 %v689, %v692
    %vm694 = vweird.f32 %v687
    %vm695 = vweird.f32 %v689
    %vm696 = vmor %vm694, %vm695
    %v697 = vsel %vm696, %v689, %v693
    %v698 = vand.u32 2147483647, %v687
    %vm699 = vcmp.eq.f32.partialorder %v698, 8.507059e+37
    %v700 = vand.u32 %v687, 2147483648
    %v701 = vor.u32 1.1754944e-38, %v700
    %v702 = vsel %vm699, %v701, %v697
    %v703 = vmul.f32 1.0, %v702
    %v704 = vrcp.pop %v688
    %v705 = vmul.f32 %v688, %v704
    %v706 = vsub.f32 1.0, %v705
    %v707 = vmul.f32 %v704, %v706
    %v708 = vadd.f32 %v704, %v707
    %vm709 = vweird.f32 %v688
    %vm710 = vweird.f32 %v704
    %vm711 = vmor %vm709, %vm710
    %v712 = vsel %vm711, %v704, %v708
    %v713 = vand.u32 2147483647, %v688
    %vm714 = vcmp.eq.f32.partialorder %v713, 8.507059e+37
    %v715 = vand.u32 %v688, 2147483648
    %v716 = vor.u32 1.1754944e-38, %v715
    %v717 = vsel %vm714, %v716, %v712
    %v718 = vmul.f32 1.0, %v717
    %v719 = vtanh.pop %v679
    %v720 = vtanh.pop %v680
    %v723 = vrot.slane %v631, 7
    %v724 = vrot.slane %v632, 7
    %v727 = vmul.f32 %v703, %v723
    %v728 = vmul.f32 %v718, %v724
    %731 = vrot.lane.b32.xlu0 %v719, 64
    %v732 = vpop.permute.xlu0 %731
    %733 = vrot.lane.b32.xlu0 %v720, 64
    %v734 = vpop.permute.xlu0 %733
    %v737 = vmul.f32 %v703, %v732
    %v738 = vmul.f32 %v718, %v734
    %741 = vrot.lane.b32.xlu0 %v737, 32
    %v742 = vpop.permute.xlu0 %741
    %743 = vrot.lane.b32.xlu0 %v738, 32
    %v744 = vpop.permute.xlu0 %743
    %v747 = vadd.f32 %v727, %v742
    %v748 = vadd.f32 %v728, %v744
    %v749 = vtanh.pop %v747
    %v750 = vtanh.pop %v748
    %753 = vrot.lane.b32.xlu0 %v749, 64
    %v754 = vpop.permute.xlu0 %753
    %755 = vrot.lane.b32.xlu0 %v750, 64
    %v756 = vpop.permute.xlu0 %755
    %v759 = vmul.f32 %v703, %v754
    %v760 = vmul.f32 %v718, %v756
    %v763 = vrot.slane %v759, 5
    %v764 = vrot.slane %v760, 4
    %v765 = vsel %vm186, %v764, %v763
    %766 = vrot.lane.b32.xlu0 %v765, 32
    %v767 = vpop.permute.xlu0 %766
    %v768 = vsel %vm79, %v767, 0
    %770 = vmatpush.msra.mxu0 0.0
    %771 = vmatpush.msra.mxu0 0.0
    %772 = vmatpush.msra.mxu0 0.0
    %773 = vmatpush.msra.mxu0 0.0
    %774 = vmatpush.msra.mxu0 0.0
    %775 = vmatpush.msra.mxu0 0.0
    %776 = vmatpush.msra.mxu0 0.0
    %777 = vmatpush.msra.mxu0 0.0
    %778 = vmatpush.msra.mxu0 0.0
    %779 = vmatpush.msra.mxu0 0.0
    %780 = vmatpush.msra.mxu0 0.0
    %781 = vmatpush.msra.mxu0 0.0
    %782 = vmatpush.msra.mxu0 %v78
    %783 = vmatpush.msra.mxu0 %v77
    %784 = vmatpush.msra.mxu0 %v76
    %785 = vmatpush.msra.mxu0 %v75
    %786 = vmatmul.f32.gmra.mxu0 %v768
    %v787 = vpop.f32.mrf.mxu0
    %v788 = vadd.f32 0.0, %v787
    %789 = vdwg.mxu0
    %v791 = vrot.slane %v788, 2
    %v792 = vrot.slane %v788, 3
    %v795 = vadd.f32 %v70, %v791
    %v796 = vadd.f32 %v73, %v792
    %v797 = vxor.u32 %v795, 2147483648
    %v798 = vxor.u32 %v796, 2147483648
    %v799 = vmul.f32 %v797, 1.442695
    %v800 = vpow.pop %v799
    %v801 = vmul.f32 %v798, 1.442695
    %v802 = vpow.pop %v801
    %v803 = vadd.f32 %v800, 1.0
    %v804 = vadd.f32 %v802, 1.0
    %v805 = vrcp.pop %v803
    %v806 = vmul.f32 %v803, %v805
    %v807 = vsub.f32 1.0, %v806
    %v808 = vmul.f32 %v805, %v807
    %v809 = vadd.f32 %v805, %v808
    %vm810 = vweird.f32 %v803
    %vm811 = vweird.f32 %v805
    %vm812 = vmor %vm810, %vm811
    %v813 = vsel %vm812, %v805, %v809
    %v814 = vand.u32 2147483647, %v803
    %vm815 = vcmp.eq.f32.partialorder %v814, 8.507059e+37
    %v816 = vand.u32 %v803, 2147483648
    %v817 = vor.u32 1.1754944e-38, %v816
    %v818 = vsel %vm815, %v817, %v813
    %v819 = vmul.f32 1.0, %v818
    %v820 = vrcp.pop %v804
    %v821 = vmul.f32 %v804, %v820
    %v822 = vsub.f32 1.0, %v821
    %v823 = vmul.f32 %v820, %v822
    %v824 = vadd.f32 %v820, %v823
    %vm825 = vweird.f32 %v804
    %vm826 = vweird.f32 %v820
    %vm827 = vmor %vm825, %vm826
    %v828 = vsel %vm827, %v820, %v824
    %v829 = vand.u32 2147483647, %v804
    %vm830 = vcmp.eq.f32.partialorder %v829, 8.507059e+37
    %v831 = vand.u32 %v804, 2147483648
    %v832 = vor.u32 1.1754944e-38, %v831
    %v833 = vsel %vm830, %v832, %v828
    %v834 = vmul.f32 1.0, %v833
    %v835 = vtanh.pop %v795
    %v836 = vtanh.pop %v796
    %v839 = vrot.slane %v747, 7
    %v840 = vrot.slane %v748, 7
    %v843 = vmul.f32 %v819, %v839
    %v844 = vmul.f32 %v834, %v840
    %847 = vrot.lane.b32.xlu0 %v835, 64
    %v848 = vpop.permute.xlu0 %847
    %849 = vrot.lane.b32.xlu0 %v836, 64
    %v850 = vpop.permute.xlu0 %849
    %v853 = vmul.f32 %v819, %v848
    %v854 = vmul.f32 %v834, %v850
    %857 = vrot.lane.b32.xlu0 %v853, 32
    %v858 = vpop.permute.xlu0 %857
    %859 = vrot.lane.b32.xlu0 %v854, 32
    %v860 = vpop.permute.xlu0 %859
    %v863 = vadd.f32 %v843, %v858
    %v864 = vadd.f32 %v844, %v860
    %v865 = vtanh.pop %v863
    %v866 = vtanh.pop %v864
    %869 = vrot.lane.b32.xlu0 %v865, 64
    %v870 = vpop.permute.xlu0 %869
    %871 = vrot.lane.b32.xlu0 %v866, 64
    %v872 = vpop.permute.xlu0 %871
    %v875 = vmul.f32 %v819, %v870
    %v876 = vmul.f32 %v834, %v872
    %v879 = vrot.slane %v875, 6
    %v880 = vrot.slane %v876, 5
    %v881 = vsel %vm186, %v880, %v879
    %882 = vrot.lane.b32.xlu0 %v881, 32
    %v883 = vpop.permute.xlu0 %882
    %v884 = vsel %vm79, %v883, 0
    %886 = vmatpush.msra.mxu0 0.0
    %887 = vmatpush.msra.mxu0 0.0
    %888 = vmatpush.msra.mxu0 0.0
    %889 = vmatpush.msra.mxu0 0.0
    %890 = vmatpush.msra.mxu0 0.0
    %891 = vmatpush.msra.mxu0 0.0
    %892 = vmatpush.msra.mxu0 0.0
    %893 = vmatpush.msra.mxu0 0.0
    %894 = vmatpush.msra.mxu0 0.0
    %895 = vmatpush.msra.mxu0 0.0
    %896 = vmatpush.msra.mxu0 0.0
    %897 = vmatpush.msra.mxu0 0.0
    %898 = vmatpush.msra.mxu0 %v78
    %899 = vmatpush.msra.mxu0 %v77
    %900 = vmatpush.msra.mxu0 %v76
    %901 = vmatpush.msra.mxu0 %v75
    %902 = vmatmul.f32.gmra.mxu0 %v884
    %v903 = vpop.f32.mrf.mxu0
    %v904 = vadd.f32 0.0, %v903
    %905 = vdwg.mxu0
    %v907 = vrot.slane %v904, 1
    %v908 = vrot.slane %v904, 2
    %v911 = vadd.f32 %v70, %v907
    %v912 = vadd.f32 %v73, %v908
    %v913 = vxor.u32 %v911, 2147483648
    %v914 = vxor.u32 %v912, 2147483648
    %v915 = vmul.f32 %v913, 1.442695
    %v916 = vpow.pop %v915
    %v917 = vmul.f32 %v914, 1.442695
    %v918 = vpow.pop %v917
    %v919 = vadd.f32 %v916, 1.0
    %v920 = vadd.f32 %v918, 1.0
    %v921 = vrcp.pop %v919
    %v922 = vmul.f32 %v919, %v921
    %v923 = vsub.f32 1.0, %v922
    %v924 = vmul.f32 %v921, %v923
    %v925 = vadd.f32 %v921, %v924
    %vm926 = vweird.f32 %v919
    %vm927 = vweird.f32 %v921
    %vm928 = vmor %vm926, %vm927
    %v929 = vsel %vm928, %v921, %v925
    %v930 = vand.u32 2147483647, %v919
    %vm931 = vcmp.eq.f32.partialorder %v930, 8.507059e+37
    %v932 = vand.u32 %v919, 2147483648
    %v933 = vor.u32 1.1754944e-38, %v932
    %v934 = vsel %vm931, %v933, %v929
    %v935 = vmul.f32 1.0, %v934
    %v936 = vrcp.pop %v920
    %v937 = vmul.f32 %v920, %v936
    %v938 = vsub.f32 1.0, %v937
    %v939 = vmul.f32 %v936, %v938
    %v940 = vadd.f32 %v936, %v939
    %vm941 = vweird.f32 %v920
    %vm942 = vweird.f32 %v936
    %vm943 = vmor %vm941, %vm942
    %v944 = vsel %vm943, %v936, %v940
    %v945 = vand.u32 2147483647, %v920
    %vm946 = vcmp.eq.f32.partialorder %v945, 8.507059e+37
    %v947 = vand.u32 %v920, 2147483648
    %v948 = vor.u32 1.1754944e-38, %v947
    %v949 = vsel %vm946, %v948, %v944
    %v950 = vmul.f32 1.0, %v949
    %v951 = vtanh.pop %v911
    %v952 = vtanh.pop %v912
    %v955 = vrot.slane %v863, 7
    %v956 = vrot.slane %v864, 7
    %v959 = vmul.f32 %v935, %v955
    %v960 = vmul.f32 %v950, %v956
    %963 = vrot.lane.b32.xlu0 %v951, 64
    %v964 = vpop.permute.xlu0 %963
    %965 = vrot.lane.b32.xlu0 %v952, 64
    %v966 = vpop.permute.xlu0 %965
    %v969 = vmul.f32 %v935, %v964
    %v970 = vmul.f32 %v950, %v966
    %973 = vrot.lane.b32.xlu0 %v969, 32
    %v974 = vpop.permute.xlu0 %973
    %975 = vrot.lane.b32.xlu0 %v970, 32
    %v976 = vpop.permute.xlu0 %975
    %v979 = vadd.f32 %v959, %v974
    %v980 = vadd.f32 %v960, %v976
    %v981 = vtanh.pop %v979
    %v982 = vtanh.pop %v980
    %985 = vrot.lane.b32.xlu0 %v981, 64
    %v986 = vpop.permute.xlu0 %985
    %987 = vrot.lane.b32.xlu0 %v982, 64
    %v988 = vpop.permute.xlu0 %987
    %v991 = vmul.f32 %v935, %v986
    %v992 = vmul.f32 %v950, %v988
    %v995 = vrot.slane %v992, 7
    %996 = vrot.lane.b32.xlu0 %v991, 32
    %v997 = vpop.permute.xlu0 %996
    %998 = vrot.lane.b32.xlu0 %v995, 32
    %v999 = vpop.permute.xlu0 %998
    %vm1002 = vcmask 261127
    %1003 = vst.msk [vmem:[#allocation5 - $0x7] sm:$0x80] %vm1002, %v997
    %vm1004 = vcmask 253952
    %1005 = vst.msk [vmem:[#allocation5 + $0x1] sm:$0x1] %vm1004, %v999
    // Predicated region
    $region22: #{lstm_pallas.1} parent=1 // pred_check
      _
    $region23: #{lstm_pallas.1} parent=1 // pred_check_branch
      %1007 = sbr.rel (0) target = $region25
    $region24: #{lstm_pallas.1} parent=1 // pred_region
      %1009 = vsyncadd [#allocation4], 0
      %s1011 = sshll.u32 [#allocation5], 4
      %s1012 = int_to_ptr.vmem [resolvable:$true] %s1011
      %s1013 = sshll.u32 %s4, 4
      %s1014 = int_to_ptr.hbm [resolvable:$true] %s1013
      %1016 = dma.vmem_to_hbm [thread:$0]  %s1012, 32, %s1014, [#allocation4]
    $region25: #{lstm_pallas.1} parent=1 // pred_fallthru
      _
    // Predicated region
    $region26: #{lstm_pallas.1} parent=1 // pred_check
      _
    $region27: #{lstm_pallas.1} parent=1 // pred_check_branch
      %1018 = sbr.rel (0) target = $region29
    $region28: #{lstm_pallas.1} parent=1 // pred_region
      %1020 = dma.done [#allocation4], 32
    $region29: #{lstm_pallas.1} parent=1 // pred_fallthru
      _
    %1021 = vsyncpa [#allocation3], 1
    %1022 = vsyncpa [#allocation4], 1

</llo_original>
